<compile_context>
chip_gen: v6e
topology: v6e:2x2x1
jax: 0.10.0
libtpu: 0.0.40
codegen_flags: <defaults>
</compile_context>

<pallas_src>
import functools

import jax
import jax.numpy as jnp
from jax import lax
from jax.experimental import pallas as pl
from jax.experimental.pallas import tpu as pltpu


def _leaky(x, slope=0.01):
    return jnp.where(x > 0, x, slope * x)


def _round_up(x, m):
    return ((x + m - 1) // m) * m


def resblock_kernel(x_ref, w1_ref, b1_ref, w2_ref, b2_ref, o_ref, *,
                    real_len, compute_dtype):
    # x_ref : (Bt, Cp, Lp)  f32 input block (L zero-padded to Lp, Lp % 128 == 0)
    # w*_ref: (3, Cp, Cp)   per-tap conv weights [k, c_out, c_in], k in {0,1,2}
    # b*_ref: (Cp, 1)       biases (f32)
    # o_ref : (Bt, Cp, Lp)
    Bt, Cp, Lp = x_ref.shape
    cdt = compute_dtype

    # Conv1d zero-padding masks, hoisted & broadcast once, reused by both convs:
    #   k=0 tap (left neighbour)  must be zero at position 0,
    #   k=2 tap (right neighbour) must be zero at the last *real* position.
    pos = lax.broadcasted_iota(jnp.int32, (Cp, Lp), 1)
    not_first = pos != 0
    not_last = pos != (real_len - 1)

    # Per-tap weight matrices, hoisted out of the batch loop (cast only for MXU).
    w1l = w1_ref[0].astype(cdt); w1c = w1_ref[1].astype(cdt); w1r = w1_ref[2].astype(cdt)
    w2l = w2_ref[0].astype(cdt); w2c = w2_ref[1].astype(cdt); w2r = w2_ref[2].astype(cdt)
    b1 = b1_ref[...]
    b2 = b2_ref[...]

    def conv3(wl, wc, wr, v):
        # v: (Cp, Lp) f32.  Three MXU dots summed in f32 -- no VMEM staging.
        vl = jnp.where(not_first, pltpu.roll(v, shift=1, axis=1), 0.0)       # v[:, i-1]
        vr = jnp.where(not_last, pltpu.roll(v, shift=Lp - 1, axis=1), 0.0)   # v[:, i+1]
        acc = jnp.dot(wc, v.astype(cdt), preferred_element_type=jnp.float32)
        acc = acc + jnp.dot(wl, vl.astype(cdt), preferred_element_type=jnp.float32)
        acc = acc + jnp.dot(wr, vr.astype(cdt), preferred_element_type=jnp.float32)
        return acc

    for bt in range(Bt):  # Bt is static and small (<= 8): cheap unroll
        x = x_ref[bt].astype(jnp.float32)
        h = _leaky(conv3(w1l, w1c, w1r, x) + b1)
        o = conv3(w2l, w2c, w2r, h) + b2 + x
        o_ref[bt] = _leaky(o).astype(o_ref.dtype)


def residual_block(x, w1, b1, w2, b2, *, compute_dtype=jnp.float32):
    """x: (B, C, L) f32;  w*: (C, C, 3) PyTorch Conv1d layout;  b*: (C,)."""
    B, C, L = x.shape
    Cp = _round_up(C, 8)       # sublane-aligned channels
    Lp = _round_up(L, 128)     # lane-dense length (dense vst on output)

    # Batch block per grid step: aim at up to ~2 MiB of input, keep >= 2 grid
    # blocks when B allows (v7x: 2 TensorCores share the "parallel" axis),
    # and bound the in-kernel unroll.
    per_batch_bytes = Cp * Lp * 4
    Bt = max(1, min(B, (2 << 20) // per_batch_bytes))
    if B >= 2:
        Bt = min(Bt, pl.cdiv(B, 2))
    Bt = min(Bt, 8)
    nb = pl.cdiv(B, Bt)
    Bp = nb * Bt

    # Zero-pad batch / channels / length.  No HBM-level transpose or batch fold.
    xp = jnp.pad(x.astype(jnp.float32), ((0, Bp - B), (0, Cp - C), (0, Lp - L)))

    # PyTorch Conv1d weight (C_out, C_in, 3) -> per-tap matrices (3, Cp, Cp).
    def stack_w(w):
        wk = jnp.transpose(w, (2, 0, 1)).astype(jnp.float32)      # (3, C_out, C_in)
        return jnp.zeros((3, Cp, Cp), jnp.float32).at[:, :C, :C].set(wk)

    w1s, w2s = stack_w(w1), stack_w(w2)
    b1c = jnp.zeros((Cp, 1), jnp.float32).at[:C, 0].set(b1.astype(jnp.float32))
    b2c = jnp.zeros((Cp, 1), jnp.float32).at[:C, 0].set(b2.astype(jnp.float32))

    # VMEM budget: in + out, double-buffered, plus weights; cap well below the
    # 64 MiB physical VMEM of a v7x TensorCore.
    est = 2 * 2 * Bt * Cp * Lp * 4 + 2 * (3 * Cp * Cp + Cp) * 4
    vmem_limit = int(min(48 << 20, max(16 << 20, 4 * est)))

    out = pl.pallas_call(
        functools.partial(resblock_kernel, real_len=L, compute_dtype=compute_dtype),
        out_shape=jax.ShapeDtypeStruct((Bp, Cp, Lp), jnp.float32),
        grid=(nb,),
        in_specs=[
            pl.BlockSpec((Bt, Cp, Lp), lambda b: (b, 0, 0)),   # input slab
            pl.BlockSpec((3, Cp, Cp), lambda b: (0, 0, 0)),    # conv1 weights
            pl.BlockSpec((Cp, 1), lambda b: (0, 0)),           # conv1 bias
            pl.BlockSpec((3, Cp, Cp), lambda b: (0, 0, 0)),    # conv2 weights
            pl.BlockSpec((Cp, 1), lambda b: (0, 0)),           # conv2 bias
        ],
        out_specs=pl.BlockSpec((Bt, Cp, Lp), lambda b: (b, 0, 0)),
        compiler_params=pltpu.CompilerParams(
            dimension_semantics=("parallel",),
            vmem_limit_bytes=vmem_limit,
        ),
    )(xp, w1s, b1c, w2s, b2c)

    return out[:B, :C, :L].astype(x.dtype)


def reference_forward(x, w1, b1, w2, b2):
    """Pure-JAX reference matching PyTorch Conv1d semantics (NCL / OIW)."""
    dn = lax.conv_dimension_numbers(x.shape, w1.shape, ("NCH", "OIH", "NCH"))
    h = lax.conv_general_dilated(x, w1, (1,), ((1, 1),), dimension_numbers=dn)
    h = _leaky(h + b1[None, :, None])
    o = lax.conv_general_dilated(h, w2, (1,), ((1, 1),), dimension_numbers=dn)
    o = o + b2[None, :, None] + x
    return _leaky(o)


if __name__ == "__main__":
    B, C, L = 2, 4, 16  # batch, channels, sequence length
    key = jax.random.PRNGKey(0)
    kx, kw1, kb1, kw2, kb2 = jax.random.split(key, 5)

    # Deterministic init mimicking PyTorch Conv1d default (uniform +-1/sqrt(fan_in)).
    fan_in = C * 3
    bound = 1.0 / (fan_in ** 0.5)
    x = jax.random.normal(kx, (B, C, L), dtype=jnp.float32)
    w1 = jax.random.uniform(kw1, (C, C, 3), jnp.float32, -bound, bound)
    b1 = jax.random.uniform(kb1, (C,), jnp.float32, -bound, bound)
    w2 = jax.random.uniform(kw2, (C, C, 3), jnp.float32, -bound, bound)
    b2 = jax.random.uniform(kb2, (C,), jnp.float32, -bound, bound)

    out = residual_block(x, w1, b1, w2, b2)
    out = jax.block_until_ready(out)

    ref = reference_forward(x, w1, b1, w2, b2)
    assert out.shape == (B, C, L)
    assert jnp.allclose(out, ref, atol=1e-5, rtol=1e-5), "mismatch vs reference"

    print("KERNEL_OK")
</pallas_src>

<mosaic_0001>
module attributes {stable_mosaic.version = 11 : i64} {
  func.func @resblock_kernel(%arg0: i32, %arg1: memref<1x8x128xf32, #tpu.memory_space<vmem>>, %arg2: memref<3x8x8xf32, #tpu.memory_space<vmem>>, %arg3: memref<8x1xf32, #tpu.memory_space<vmem>>, %arg4: memref<3x8x8xf32, #tpu.memory_space<vmem>>, %arg5: memref<8x1xf32, #tpu.memory_space<vmem>>, %arg6: memref<1x8x128xf32, #tpu.memory_space<vmem>>) attributes {dimension_semantics = [#tpu.dimension_semantics<parallel>], iteration_bounds = array<i64: 2>, scalar_prefetch = 0 : i64, scratch_operands = 0 : i64, tpu.core_type = #tpu.core_type<tc>, window_params = [{transform_indices = @transform_0, window_bounds = array<i64: 1, 8, 128>}, {pipeline_mode = #tpu.pipeline_mode<synchronous>, transform_indices = @transform_1, window_bounds = array<i64: 3, 8, 8>}, {pipeline_mode = #tpu.pipeline_mode<synchronous>, transform_indices = @transform_2, window_bounds = array<i64: 8, 1>}, {pipeline_mode = #tpu.pipeline_mode<synchronous>, transform_indices = @transform_3, window_bounds = array<i64: 3, 8, 8>}, {pipeline_mode = #tpu.pipeline_mode<synchronous>, transform_indices = @transform_4, window_bounds = array<i64: 8, 1>}, {transform_indices = @transform_5, window_bounds = array<i64: 1, 8, 128>}]} {
    %0 = tpu.iota {dimensions = array<i32: 1>} : vector<8x128xi32>
    %c0_i32 = arith.constant 0 : i32
    %1 = vector.broadcast %c0_i32 : i32 to vector<8x128xi32>
    %2 = arith.cmpi ne, %0, %1 : vector<8x128xi32>
    %c15_i32 = arith.constant 15 : i32
    %3 = vector.broadcast %c15_i32 : i32 to vector<8x128xi32>
    %4 = arith.cmpi ne, %0, %3 : vector<8x128xi32>
    %c0 = arith.constant 0 : index
    %c0_0 = arith.constant 0 : index
    %c0_1 = arith.constant 0 : index
    %5 = vector.load %arg2[%c0, %c0_0, %c0_1] : memref<3x8x8xf32, #tpu.memory_space<vmem>>, vector<1x8x8xf32>
    %6 = vector.shape_cast %5 : vector<1x8x8xf32> to vector<8x8xf32>
    %c1 = arith.constant 1 : index
    %c0_2 = arith.constant 0 : index
    %c0_3 = arith.constant 0 : index
    %7 = vector.load %arg2[%c1, %c0_2, %c0_3] : memref<3x8x8xf32, #tpu.memory_space<vmem>>, vector<1x8x8xf32>
    %8 = vector.shape_cast %7 : vector<1x8x8xf32> to vector<8x8xf32>
    %c2 = arith.constant 2 : index
    %c0_4 = arith.constant 0 : index
    %c0_5 = arith.constant 0 : index
    %9 = vector.load %arg2[%c2, %c0_4, %c0_5] : memref<3x8x8xf32, #tpu.memory_space<vmem>>, vector<1x8x8xf32>
    %10 = vector.shape_cast %9 : vector<1x8x8xf32> to vector<8x8xf32>
    %c0_6 = arith.constant 0 : index
    %c0_7 = arith.constant 0 : index
    %c0_8 = arith.constant 0 : index
    %11 = vector.load %arg4[%c0_6, %c0_7, %c0_8] : memref<3x8x8xf32, #tpu.memory_space<vmem>>, vector<1x8x8xf32>
    %12 = vector.shape_cast %11 : vector<1x8x8xf32> to vector<8x8xf32>
    %c1_9 = arith.constant 1 : index
    %c0_10 = arith.constant 0 : index
    %c0_11 = arith.constant 0 : index
    %13 = vector.load %arg4[%c1_9, %c0_10, %c0_11] : memref<3x8x8xf32, #tpu.memory_space<vmem>>, vector<1x8x8xf32>
    %14 = vector.shape_cast %13 : vector<1x8x8xf32> to vector<8x8xf32>
    %c2_12 = arith.constant 2 : index
    %c0_13 = arith.constant 0 : index
    %c0_14 = arith.constant 0 : index
    %15 = vector.load %arg4[%c2_12, %c0_13, %c0_14] : memref<3x8x8xf32, #tpu.memory_space<vmem>>, vector<1x8x8xf32>
    %16 = vector.shape_cast %15 : vector<1x8x8xf32> to vector<8x8xf32>
    %c0_15 = arith.constant 0 : index
    %c0_16 = arith.constant 0 : index
    %17 = vector.load %arg3[%c0_15, %c0_16] : memref<8x1xf32, #tpu.memory_space<vmem>>, vector<8x1xf32>
    %c0_17 = arith.constant 0 : index
    %c0_18 = arith.constant 0 : index
    %18 = vector.load %arg5[%c0_17, %c0_18] : memref<8x1xf32, #tpu.memory_space<vmem>>, vector<8x1xf32>
    %c0_19 = arith.constant 0 : index
    %c0_20 = arith.constant 0 : index
    %c0_21 = arith.constant 0 : index
    %19 = vector.load %arg1[%c0_19, %c0_20, %c0_21] : memref<1x8x128xf32, #tpu.memory_space<vmem>>, vector<1x8x128xf32>
    %20 = vector.shape_cast %19 : vector<1x8x128xf32> to vector<8x128xf32>
    %c1_i32 = arith.constant 1 : i32
    %21 = tpu.dynamic_rotate %20 by %c1_i32 dim 1 : vector<8x128xf32>, i32 -> vector<8x128xf32>
    %cst = arith.constant 0.000000e+00 : f32
    %22 = vector.broadcast %cst : f32 to vector<8x128xf32>
    %23 = arith.select %2, %21, %22 : vector<8x128xi1>, vector<8x128xf32>
    %c127_i32 = arith.constant 127 : i32
    %24 = tpu.dynamic_rotate %20 by %c127_i32 dim 1 : vector<8x128xf32>, i32 -> vector<8x128xf32>
    %cst_22 = arith.constant 0.000000e+00 : f32
    %25 = vector.broadcast %cst_22 : f32 to vector<8x128xf32>
    %26 = arith.select %4, %24, %25 : vector<8x128xi1>, vector<8x128xf32>
    %cst_23 = arith.constant dense<0.000000e+00> : vector<8x128xf32>
    %27 = tpu.matmul %8, %20, %cst_23 {dimension_numbers = #tpu.dot_dimension_numbers<[1], [0], [0], [1], [0, 0, 1, 1], [], []>} : vector<8x8xf32>, vector<8x128xf32>, vector<8x128xf32> -> vector<8x128xf32>
    %cst_24 = arith.constant dense<0.000000e+00> : vector<8x128xf32>
    %28 = tpu.matmul %6, %23, %cst_24 {dimension_numbers = #tpu.dot_dimension_numbers<[1], [0], [0], [1], [0, 0, 1, 1], [], []>} : vector<8x8xf32>, vector<8x128xf32>, vector<8x128xf32> -> vector<8x128xf32>
    %29 = arith.addf %27, %28 : vector<8x128xf32>
    %cst_25 = arith.constant dense<0.000000e+00> : vector<8x128xf32>
    %30 = tpu.matmul %10, %26, %cst_25 {dimension_numbers = #tpu.dot_dimension_numbers<[1], [0], [0], [1], [0, 0, 1, 1], [], []>} : vector<8x8xf32>, vector<8x128xf32>, vector<8x128xf32> -> vector<8x128xf32>
    %31 = arith.addf %29, %30 : vector<8x128xf32>
    %32 = vector.broadcast %17 : vector<8x1xf32> to vector<8x128xf32>
    %33 = arith.addf %31, %32 : vector<8x128xf32>
    %cst_26 = arith.constant 0.000000e+00 : f32
    %34 = vector.broadcast %cst_26 : f32 to vector<8x128xf32>
    %35 = arith.cmpf ogt, %33, %34 : vector<8x128xf32>
    %cst_27 = arith.constant 0.00999999977 : f32
    %36 = vector.broadcast %cst_27 : f32 to vector<8x128xf32>
    %37 = arith.mulf %36, %33 : vector<8x128xf32>
    %38 = arith.select %35, %33, %37 : vector<8x128xi1>, vector<8x128xf32>
    %c1_i32_28 = arith.constant 1 : i32
    %39 = tpu.dynamic_rotate %38 by %c1_i32_28 dim 1 : vector<8x128xf32>, i32 -> vector<8x128xf32>
    %cst_29 = arith.constant 0.000000e+00 : f32
    %40 = vector.broadcast %cst_29 : f32 to vector<8x128xf32>
    %41 = arith.select %2, %39, %40 : vector<8x128xi1>, vector<8x128xf32>
    %c127_i32_30 = arith.constant 127 : i32
    %42 = tpu.dynamic_rotate %38 by %c127_i32_30 dim 1 : vector<8x128xf32>, i32 -> vector<8x128xf32>
    %cst_31 = arith.constant 0.000000e+00 : f32
    %43 = vector.broadcast %cst_31 : f32 to vector<8x128xf32>
    %44 = arith.select %4, %42, %43 : vector<8x128xi1>, vector<8x128xf32>
    %cst_32 = arith.constant dense<0.000000e+00> : vector<8x128xf32>
    %45 = tpu.matmul %14, %38, %cst_32 {dimension_numbers = #tpu.dot_dimension_numbers<[1], [0], [0], [1], [0, 0, 1, 1], [], []>} : vector<8x8xf32>, vector<8x128xf32>, vector<8x128xf32> -> vector<8x128xf32>
    %cst_33 = arith.constant dense<0.000000e+00> : vector<8x128xf32>
    %46 = tpu.matmul %12, %41, %cst_33 {dimension_numbers = #tpu.dot_dimension_numbers<[1], [0], [0], [1], [0, 0, 1, 1], [], []>} : vector<8x8xf32>, vector<8x128xf32>, vector<8x128xf32> -> vector<8x128xf32>
    %47 = arith.addf %45, %46 : vector<8x128xf32>
    %cst_34 = arith.constant dense<0.000000e+00> : vector<8x128xf32>
    %48 = tpu.matmul %16, %44, %cst_34 {dimension_numbers = #tpu.dot_dimension_numbers<[1], [0], [0], [1], [0, 0, 1, 1], [], []>} : vector<8x8xf32>, vector<8x128xf32>, vector<8x128xf32> -> vector<8x128xf32>
    %49 = arith.addf %47, %48 : vector<8x128xf32>
    %50 = vector.broadcast %18 : vector<8x1xf32> to vector<8x128xf32>
    %51 = arith.addf %49, %50 : vector<8x128xf32>
    %52 = arith.addf %51, %20 : vector<8x128xf32>
    %cst_35 = arith.constant 0.000000e+00 : f32
    %53 = vector.broadcast %cst_35 : f32 to vector<8x128xf32>
    %54 = arith.cmpf ogt, %52, %53 : vector<8x128xf32>
    %cst_36 = arith.constant 0.00999999977 : f32
    %55 = vector.broadcast %cst_36 : f32 to vector<8x128xf32>
    %56 = arith.mulf %55, %52 : vector<8x128xf32>
    %57 = arith.select %54, %52, %56 : vector<8x128xi1>, vector<8x128xf32>
    %c0_37 = arith.constant 0 : index
    %c0_38 = arith.constant 0 : index
    %c0_39 = arith.constant 0 : index
    %58 = vector.load %arg6[%c0_37, %c0_38, %c0_39] : memref<1x8x128xf32, #tpu.memory_space<vmem>>, vector<1x8x128xf32>
    %59 = vector.shape_cast %58 : vector<1x8x128xf32> to vector<8x128xf32>
    %60 = vector.shape_cast %57 : vector<8x128xf32> to vector<1x8x128xf32>
    tpu.vector_store %arg6[%c0_37, %c0_38, %c0_39], %60 {strides = array<i32>} : memref<1x8x128xf32, #tpu.memory_space<vmem>>, vector<1x8x128xf32>,
    return
  }
  func.func @transform_0(%arg0: i32) -> (i32, i32, i32) {
    %c0_i32 = arith.constant 0 : i32
    %c0_i32_0 = arith.constant 0 : i32
    %c0_i32_1 = arith.constant 0 : i32
    return %arg0, %c0_i32, %c0_i32_0 : i32, i32, i32
  }
  func.func @transform_1(%arg0: i32) -> (i32, i32, i32) {
    %c0_i32 = arith.constant 0 : i32
    %c0_i32_0 = arith.constant 0 : i32
    %c0_i32_1 = arith.constant 0 : i32
    %c0_i32_2 = arith.constant 0 : i32
    return %c0_i32, %c0_i32_0, %c0_i32_1 : i32, i32, i32
  }
  func.func @transform_2(%arg0: i32) -> (i32, i32) {
    %c0_i32 = arith.constant 0 : i32
    %c0_i32_0 = arith.constant 0 : i32
    %c0_i32_1 = arith.constant 0 : i32
    return %c0_i32, %c0_i32_0 : i32, i32
  }
  func.func @transform_3(%arg0: i32) -> (i32, i32, i32) {
    %c0_i32 = arith.constant 0 : i32
    %c0_i32_0 = arith.constant 0 : i32
    %c0_i32_1 = arith.constant 0 : i32
    %c0_i32_2 = arith.constant 0 : i32
    return %c0_i32, %c0_i32_0, %c0_i32_1 : i32, i32, i32
  }
  func.func @transform_4(%arg0: i32) -> (i32, i32) {
    %c0_i32 = arith.constant 0 : i32
    %c0_i32_0 = arith.constant 0 : i32
    %c0_i32_1 = arith.constant 0 : i32
    return %c0_i32, %c0_i32_0 : i32, i32
  }
  func.func @transform_5(%arg0: i32) -> (i32, i32, i32) {
    %c0_i32 = arith.constant 0 : i32
    %c0_i32_0 = arith.constant 0 : i32
    %c0_i32_1 = arith.constant 0 : i32
    return %arg0, %c0_i32, %c0_i32_0 : i32, i32, i32
  }
}

</mosaic_0001>

<llo_original>
// kernel: tpu_custom_call.1
$region0: #{tpu_custom_call.1}
  #allocation0 [shape = 'u32[]', space=smem, size = 0x4, offset = 0x4, fixed_abs, tag = 'smem constant byte address 0x4 - core index']
  #allocation1 [shape = 'u32[144,128]{1,0:T(1,128)}', space=vmem, size = 0x12000, scoped, tag = 'internal scratch']
  %s0 = inlined_call_operand.vmem [shape: f32[2,8,128], index: 0, kind: input, shape index: {}]
  %s1 = inlined_call_operand.hbm [shape: f32[3,8,8], index: 1, kind: input, shape index: {}]
  %s2 = inlined_call_operand.vmem [shape: f32[8,1], index: 2, kind: input, shape index: {}]
  %s3 = inlined_call_operand.hbm [shape: f32[3,8,8], index: 3, kind: input, shape index: {}]
  %s4 = inlined_call_operand.vmem [shape: f32[8,1], index: 4, kind: input, shape index: {}]
  %s5 = inlined_call_operand.hbm [shape: f32[2,8,128], index: 5, kind: output, shape index: {}]
  %s6 = sld [smem:[#allocation0]]
  $region61: #{tpu_custom_call.1} parent=0
    _
  %s8 = ssub.s32 1, %s6
  %s9 = scalar_select 0, %s8, %s6
  $region1: #{tpu_custom_call.1} parent=0
    #allocation2 [shape = 'u8[12288]{0}', space=vmem, size = 0x3000, scoped, tag = 'input window, operand 1, single buffered']
    #allocation3 [shape = 's32[2]{0}', space=sflag, size = 0x8, scoped, tag = 'scoped memory for tpu_custom_call.1']
    #allocation4 [shape = 's32[2]{0}', space=sflag, size = 0x8, scoped, tag = 'scoped memory for tpu_custom_call.1']
    #allocation5 [shape = 'u8[12288]{0}', space=vmem, size = 0x3000, scoped, tag = 'input window, operand 3, single buffered']
    #allocation6 [shape = 's32[1]{0}', space=sflag, size = 0x4, scoped, tag = 'scoped memory for tpu_custom_call.1']
    #allocation7 [shape = 'u8[8192]{0}', space=vmem, size = 0x2000, scoped, tag = 'output window, operand 0']
    %10 = vsyncpa [#allocation3], 0
    %11 = vsyncpa [#allocation6], 0
    %12 = vsyncpa [#allocation4], 0
    %s13 = scalar_lea.sflag [#allocation4], 1
    %14 = vsyncpa %s13, 0
    loop: start=0, step=1, limit=4
    $region2: #{tpu_custom_call.1} parent=1 // loop_pre_header
      _
    $region3: #{tpu_custom_call.1} parent=1 // loop_header
      %s16 = sphi 0, %s20
      %p17 = scmp.ge.s32.totalorder %s16, 4
      %s26 = sphi 0, %s28
      %s29 = sphi 0, %s26
      %s30 = sphi 0, %s29
      %s46 = sphi 0, %s30
      %s50 = sphi 0, %s50
      %s52 = sphi 0, %s50
      %s53 = sphi 0, %s52
      %s67 = sphi 0, %s53
      %s71 = sphi 0, %s71
      %s73 = sphi 0, %s71
      %s74 = sphi 0, %s73
      %s88 = sphi 0, %s74
      %s92 = sphi 0, %s92
      %s94 = sphi 0, %s92
      %s95 = sphi 0, %s94
      %s109 = sphi 0, %s95
      %s113 = sphi 0, %s113
      %s115 = sphi 0, %s113
      %s116 = sphi 0, %s115
      %s130 = sphi 0, %s116
      %s136 = sphi 0, %s138
      %s139 = sphi 0, %s136
      %s140 = sphi 0, %s139
      %s156 = sphi 0, %s140
    $region4: #{tpu_custom_call.1} parent=1 // loop_header_branch
      %19 = sbr.rel (%p17) target = $region8
    $region5: #{tpu_custom_call.1} parent=1 // loop_body
      %s21 = ssub.s32 %s16, 1
      %s22 = ssub.s32 %s16, 2
      %s23 = sadd.s32 %s16, 1
      %s24 = ssub.s32 %s16, %s23
      %p25 = scmp.eq.s32.totalorder %s24, 0
      %s27 = sadd.s32 %s26, 1
      %s28 = scalar_select %p25, %s26, %s27
      %p31 = pneg %p25
      %p32 = scmp.eq.s32.totalorder %s16, 1
      %p33 = por %p31, %p32
      %p34 = scmp.ne.s32.totalorder %s26, %s29
      %p35 = scmp.eq.s32.totalorder %s16, 0
      %p36 = por %p34, %p35
      %p37 = scmp.ne.s32.totalorder %s26, %s29
      %p38 = scmp.eq.s32.totalorder %s21, 1
      %p39 = por %p37, %p38
      %p40 = scmp.ne.s32.totalorder %s29, %s30
      %p41 = scmp.eq.s32.totalorder %s21, 0
      %p42 = por %p40, %p41
      %p43 = scmp.ne.s32.totalorder %s29, %s30
      %p44 = scmp.eq.s32.totalorder %s22, 1
      %p45 = por %p43, %p44
      %p47 = scmp.ne.s32.totalorder %s30, %s46
      %p48 = scmp.eq.s32.totalorder %s22, 0
      %p49 = por %p47, %p48
      %s51 = sadd.s32 %s50, 1
      %p54 = scmp.eq.s32.totalorder %s16, 1
      %p55 = scmp.ne.s32.totalorder %s50, %s52
      %p56 = scmp.eq.s32.totalorder %s16, 0
      %p57 = por %p55, %p56
      %p58 = scmp.ne.s32.totalorder %s50, %s52
      %p59 = scmp.eq.s32.totalorder %s21, 1
      %p60 = por %p58, %p59
      %p61 = scmp.ne.s32.totalorder %s52, %s53
      %p62 = scmp.eq.s32.totalorder %s21, 0
      %p63 = por %p61, %p62
      %p64 = scmp.ne.s32.totalorder %s52, %s53
      %p65 = scmp.eq.s32.totalorder %s22, 1
      %p66 = por %p64, %p65
      %p68 = scmp.ne.s32.totalorder %s53, %s67
      %p69 = scmp.eq.s32.totalorder %s22, 0
      %p70 = por %p68, %p69
      %s72 = sadd.s32 %s71, 1
      %p75 = scmp.eq.s32.totalorder %s16, 1
      %p76 = scmp.ne.s32.totalorder %s71, %s73
      %p77 = scmp.eq.s32.totalorder %s16, 0
      %p78 = por %p76, %p77
      %p79 = scmp.ne.s32.totalorder %s71, %s73
      %p80 = scmp.eq.s32.totalorder %s21, 1
      %p81 = por %p79, %p80
      %p82 = scmp.ne.s32.totalorder %s73, %s74
      %p83 = scmp.eq.s32.totalorder %s21, 0
      %p84 = por %p82, %p83
      %p85 = scmp.ne.s32.totalorder %s73, %s74
      %p86 = scmp.eq.s32.totalorder %s22, 1
      %p87 = por %p85, %p86
      %p89 = scmp.ne.s32.totalorder %s74, %s88
      %p90 = scmp.eq.s32.totalorder %s22, 0
      %p91 = por %p89, %p90
      %s93 = sadd.s32 %s92, 1
      %p96 = scmp.eq.s32.totalorder %s16, 1
      %p97 = scmp.ne.s32.totalorder %s92, %s94
      %p98 = scmp.eq.s32.totalorder %s16, 0
      %p99 = por %p97, %p98
      %p100 = scmp.ne.s32.totalorder %s92, %s94
      %p101 = scmp.eq.s32.totalorder %s21, 1
      %p102 = por %p100, %p101
      %p103 = scmp.ne.s32.totalorder %s94, %s95
      %p104 = scmp.eq.s32.totalorder %s21, 0
      %p105 = por %p103, %p104
      %p106 = scmp.ne.s32.totalorder %s94, %s95
      %p107 = scmp.eq.s32.totalorder %s22, 1
      %p108 = por %p106, %p107
      %p110 = scmp.ne.s32.totalorder %s95, %s109
      %p111 = scmp.eq.s32.totalorder %s22, 0
      %p112 = por %p110, %p111
      %s114 = sadd.s32 %s113, 1
      %p117 = scmp.eq.s32.totalorder %s16, 1
      %p118 = scmp.ne.s32.totalorder %s113, %s115
      %p119 = scmp.eq.s32.totalorder %s16, 0
      %p120 = por %p118, %p119
      %p121 = scmp.ne.s32.totalorder %s113, %s115
      %p122 = scmp.eq.s32.totalorder %s21, 1
      %p123 = por %p121, %p122
      %p124 = scmp.ne.s32.totalorder %s115, %s116
      %p125 = scmp.eq.s32.totalorder %s21, 0
      %p126 = por %p124, %p125
      %p127 = scmp.ne.s32.totalorder %s115, %s116
      %p128 = scmp.eq.s32.totalorder %s22, 1
      %p129 = por %p127, %p128
      %p131 = scmp.ne.s32.totalorder %s116, %s130
      %p132 = scmp.eq.s32.totalorder %s22, 0
      %p133 = por %p131, %p132
      %s134 = ssub.s32 %s16, %s23
      %p135 = scmp.eq.s32.totalorder %s134, 0
      %s137 = sadd.s32 %s136, 1
      %s138 = scalar_select %p135, %s136, %s137
      %p141 = pneg %p135
      %p142 = scmp.eq.s32.totalorder %s16, 1
      %p143 = por %p141, %p142
      %p144 = scmp.ne.s32.totalorder %s136, %s139
      %p145 = scmp.eq.s32.totalorder %s16, 0
      %p146 = por %p144, %p145
      %p147 = scmp.ne.s32.totalorder %s136, %s139
      %p148 = scmp.eq.s32.totalorder %s21, 1
      %p149 = por %p147, %p148
      %p150 = scmp.ne.s32.totalorder %s139, %s140
      %p151 = scmp.eq.s32.totalorder %s21, 0
      %p152 = por %p150, %p151
      %p153 = scmp.ne.s32.totalorder %s139, %s140
      %p154 = scmp.eq.s32.totalorder %s22, 1
      %p155 = por %p153, %p154
      %p157 = scmp.ne.s32.totalorder %s140, %s156
      %p158 = scmp.eq.s32.totalorder %s22, 0
      %p159 = por %p157, %p158
      %p160 = scmp.le.s32.totalorder 1, %s16
      %p161 = scmp.lt.s32.totalorder %s16, 3
      %p162 = pnand %p160, %p161
      %p163 = pneg %p162
      // Predicated region
      $region9: #{tpu_custom_call.1} parent=5 // pred_check
        _
      $region10: #{tpu_custom_call.1} parent=5 // pred_check_branch
        %165 = sbr.rel (%p162) target = $region12
      $region11: #{tpu_custom_call.1} parent=5 // pred_region
        %s166 = ssub.s32 %s16, 1
        // Predicated region
        $region13: #{tpu_custom_call.1} parent=11 // pred_check
          %p167 = pneg %p63
        $region14: #{tpu_custom_call.1} parent=11 // pred_check_branch
          %169 = sbr.rel (%p167) target = $region16
        $region15: #{tpu_custom_call.1} parent=11 // pred_region
          %s171 = ssub.s32 384, 384
          %172 = vsyncadd [#allocation3], %s171
          %s173 = sshll.u32 [#allocation2], 4
          %s174 = int_to_ptr.vmem [resolvable:$true] %s173
          %179 = dma.hbm_to_vmem [thread:$0]  %s1, 384, %s174, [#allocation3], 128, 128, 8
        $region16: #{tpu_custom_call.1} parent=11 // pred_fallthru
          _
        // Predicated region
        $region17: #{tpu_custom_call.1} parent=11 // pred_check
          %p180 = pneg %p84
        $region18: #{tpu_custom_call.1} parent=11 // pred_check_branch
          %182 = sbr.rel (%p180) target = $region20
        $region19: #{tpu_custom_call.1} parent=11 // pred_region
          _
        $region20: #{tpu_custom_call.1} parent=11 // pred_fallthru
          _
        // Predicated region
        $region21: #{tpu_custom_call.1} parent=11 // pred_check
          %p183 = pneg %p105
        $region22: #{tpu_custom_call.1} parent=11 // pred_check_branch
          %185 = sbr.rel (%p183) target = $region24
        $region23: #{tpu_custom_call.1} parent=11 // pred_region
          %s187 = ssub.s32 384, 384
          %188 = vsyncadd [#allocation6], %s187
          %s189 = sshll.u32 [#allocation5], 4
          %s190 = int_to_ptr.vmem [resolvable:$true] %s189
          %195 = dma.hbm_to_vmem [thread:$0]  %s3, 384, %s190, [#allocation6], 128, 128, 8
        $region24: #{tpu_custom_call.1} parent=11 // pred_fallthru
          _
        // Predicated region
        $region25: #{tpu_custom_call.1} parent=11 // pred_check
          %p196 = pneg %p126
        $region26: #{tpu_custom_call.1} parent=11 // pred_check_branch
          %198 = sbr.rel (%p196) target = $region28
        $region27: #{tpu_custom_call.1} parent=11 // pred_region
          _
        $region28: #{tpu_custom_call.1} parent=11 // pred_fallthru
          _
      $region12: #{tpu_custom_call.1} parent=5 // pred_fallthru
        _
      %p199 = scmp.lt.s32.totalorder %s16, 2
      // Predicated region
      $region29: #{tpu_custom_call.1} parent=5 // pred_check
        %p200 = pneg %p199
      $region30: #{tpu_custom_call.1} parent=5 // pred_check_branch
        %202 = sbr.rel (%p200) target = $region32
      $region31: #{tpu_custom_call.1} parent=5 // pred_region
        // Predicated region
        $region33: #{tpu_custom_call.1} parent=31 // pred_check
          %p203 = pneg %p36
        $region34: #{tpu_custom_call.1} parent=31 // pred_check_branch
          %205 = sbr.rel (%p203) target = $region36
        $region35: #{tpu_custom_call.1} parent=31 // pred_region
          %p206 = scmp.lt.s32.totalorder %s16, 1
          %s207 = scalar_select %p206, %s16, 1
          %s208 = smul.addr %s207, 8
          %s209 = scalar_lea.vmem %s0, %s208
        $region36: #{tpu_custom_call.1} parent=31 // pred_fallthru
          _
      $region32: #{tpu_custom_call.1} parent=5 // pred_fallthru
        _
      %p210 = scmp.le.s32.totalorder 1, %s16
      %p211 = scmp.lt.s32.totalorder %s16, 3
      %p212 = pnand %p210, %p211
      %p213 = pneg %p212
      // Predicated region
      $region37: #{tpu_custom_call.1} parent=5 // pred_check
        _
      $region38: #{tpu_custom_call.1} parent=5 // pred_check_branch
        %215 = sbr.rel (%p212) target = $region40
      $region39: #{tpu_custom_call.1} parent=5 // pred_region
        %s216 = ssub.s32 %s16, 1
        // Predicated region
        $region41: #{tpu_custom_call.1} parent=39 // pred_check
          %p217 = pneg %p63
        $region42: #{tpu_custom_call.1} parent=39 // pred_check_branch
          %219 = sbr.rel (%p217) target = $region44
        $region43: #{tpu_custom_call.1} parent=39 // pred_region
          %220 = dma.done [#allocation3], 384
        $region44: #{tpu_custom_call.1} parent=39 // pred_fallthru
          _
        // Predicated region
        $region45: #{tpu_custom_call.1} parent=39 // pred_check
          %p221 = pneg %p105
        $region46: #{tpu_custom_call.1} parent=39 // pred_check_branch
          %223 = sbr.rel (%p221) target = $region48
        $region47: #{tpu_custom_call.1} parent=39 // pred_region
          %224 = dma.done [#allocation6], 384
        $region48: #{tpu_custom_call.1} parent=39 // pred_fallthru
          _
        %p225 = scmp.lt.s32.totalorder %s21, 1
        %s226 = scalar_select %p225, %s21, 1
        %s227 = smul.addr %s226, 8
        %s228 = scalar_lea.vmem %s0, %s227
        %p229 = pneg %p42
        %p230 = pneg %p39
        %p231 = pneg %p63
        %p232 = pneg %p60
        %p233 = pneg %p84
        %p234 = pneg %p81
        %p235 = pneg %p105
        %p236 = pneg %p102
        %p237 = pneg %p126
        %p238 = pneg %p123
        %p239 = pneg %p152
        %p240 = pneg %p149
        %s241 = sand.u32 %s139, 1
        %s242 = scalar_lea.sflag [#allocation4], %s241
        %s243 = sand.u32 %s139, 1
        %s244 = smul.addr %s243, 8
        %s245 = scalar_lea.vmem [#allocation7], %s244
        %p246 = scmp.lt.s32.totalorder %s21, 1
        %s247 = scalar_select %p246, %s21, 1
        %s248 = smul.addr %s247, 8
        %s249 = scalar_lea.vmem %s0, %s248
        %v250 = vlaneseq
        %v251 = vand.u32 %v250, 127
        %vm252 = vcmp.ne.s32.totalorder %v251, 0
        %vm253 = vcmp.ne.s32.totalorder %v251, 15
        %v254 = vld [vmem:[#allocation2] sm:$0xff]
        %s255 = scalar_lea.vmem [#allocation2], 8
        %v256 = vld [vmem:[%s255] sm:$0xff]
        %s257 = scalar_lea.vmem [#allocation2], 16
        %v258 = vld [vmem:[%s257] sm:$0xff]
        %v259 = vld [vmem:[#allocation5] sm:$0xff]
        %s260 = scalar_lea.vmem [#allocation5], 8
        %v261 = vld [vmem:[%s260] sm:$0xff]
        %s262 = scalar_lea.vmem [#allocation5], 16
        %v263 = vld [vmem:[%s262] sm:$0xff]
        %v264 = vld [vmem:[%s2] sm:$0xff]
        %v265 = vld [vmem:[%s4] sm:$0xff]
        %v266 = vld [vmem:[%s249] sm:$0xff]
        %267 = vrot.lane.b32.xlu0 %v266, 1
        %v268 = vpop.permute.xlu0 %267
        %v269 = vsel %vm252, %v268, 0.0
        %270 = vrot.lane.b32.xlu0 %v266, 127
        %v271 = vpop.permute.xlu0 %270
        %v272 = vsel %vm253, %v271, 0.0
        %vm273 = vcmask 64512
        %v275 = vsel %vm273, %v254, 0
        %277 = vmatprep.subr.mxu0 0.0
        %278 = vmatpush1.msra.mxu0 0.0
        %279 = vmatprep.subr.mxu0 0.0
        %280 = vmatpush1.msra.mxu0 0.0
        %281 = vmatprep.subr.mxu0 0.0
        %282 = vmatpush1.msra.mxu0 0.0
        %283 = vmatprep.subr.mxu0 0.0
        %284 = vmatpush1.msra.mxu0 0.0
        %285 = vmatprep.subr.mxu0 0.0
        %286 = vmatpush1.msra.mxu0 0.0
        %287 = vmatprep.subr.mxu0 0.0
        %288 = vmatpush1.msra.mxu0 0.0
        %289 = vmatprep.subr.mxu0 0.0
        %290 = vmatpush1.msra.mxu0 0.0
        %291 = vmatprep.subr.mxu0 0.0
        %292 = vmatpush1.msra.mxu0 0.0
        %293 = vmatprep.subr.mxu0 0.0
        %294 = vmatpush1.msra.mxu0 0.0
        %295 = vmatprep.subr.mxu0 0.0
        %296 = vmatpush1.msra.mxu0 0.0
        %297 = vmatprep.subr.mxu0 0.0
        %298 = vmatpush1.msra.mxu0 0.0
        %299 = vmatprep.subr.mxu0 0.0
        %300 = vmatpush1.msra.mxu0 0.0
        %301 = vmatprep.subr.mxu0 0.0
        %302 = vmatpush1.msra.mxu0 0.0
        %303 = vmatprep.subr.mxu0 0.0
        %304 = vmatpush1.msra.mxu0 0.0
        %305 = vmatprep.subr.mxu0 0.0
        %306 = vmatpush1.msra.mxu0 0.0
        %307 = vmatprep.subr.mxu0 0.0
        %308 = vmatpush1.msra.mxu0 %v269
        %309 = vmatprep.subr.mxu0 0.0
        %310 = vmatpush2.msra.mxu0 0.0
        %311 = vmatprep.subr.mxu0 0.0
        %312 = vmatpush2.msra.mxu0 0.0
        %313 = vmatprep.subr.mxu0 0.0
        %314 = vmatpush2.msra.mxu0 0.0
        %315 = vmatprep.subr.mxu0 0.0
        %316 = vmatpush2.msra.mxu0 0.0
        %317 = vmatprep.subr.mxu0 0.0
        %318 = vmatpush2.msra.mxu0 0.0
        %319 = vmatprep.subr.mxu0 0.0
        %320 = vmatpush2.msra.mxu0 0.0
        %321 = vmatprep.subr.mxu0 0.0
        %322 = vmatpush2.msra.mxu0 0.0
        %323 = vmatprep.subr.mxu0 0.0
        %324 = vmatpush2.msra.mxu0 0.0
        %325 = vmatprep.subr.mxu0 0.0
        %326 = vmatpush2.msra.mxu0 0.0
        %327 = vmatprep.subr.mxu0 0.0
        %328 = vmatpush2.msra.mxu0 0.0
        %329 = vmatprep.subr.mxu0 0.0
        %330 = vmatpush2.msra.mxu0 0.0
        %331 = vmatprep.subr.mxu0 0.0
        %332 = vmatpush2.msra.mxu0 0.0
        %333 = vmatprep.subr.mxu0 0.0
        %334 = vmatpush2.msra.mxu0 0.0
        %335 = vmatprep.subr.mxu0 0.0
        %336 = vmatpush2.msra.mxu0 0.0
        %337 = vmatprep.subr.mxu0 0.0
        %338 = vmatpush2.msra.mxu0 0.0
        %339 = vmatprep.subr.mxu0 0.0
        %340 = vmatpush2.msra.mxu0 0.0
        %341 = vmatprep.mubr.f32.mxu0 0.0
        %342 = vmatmul.mubr.f32.gmra.mxu0 %v275
        %v343 = vpop.f32.mrf.mxu0
        %v344 = vadd.f32 0.0, %v343
        %v345 = vpop.f32.mrf.mxu0
        %346 = vdwg.mxu0
        %v348 = vsel %vm273, %v256, 0
        %350 = vmatprep.subr.mxu0 0.0
        %351 = vmatpush1.msra.mxu0 0.0
        %352 = vmatprep.subr.mxu0 0.0
        %353 = vmatpush1.msra.mxu0 0.0
        %354 = vmatprep.subr.mxu0 0.0
        %355 = vmatpush1.msra.mxu0 0.0
        %356 = vmatprep.subr.mxu0 0.0
        %357 = vmatpush1.msra.mxu0 0.0
        %358 = vmatprep.subr.mxu0 0.0
        %359 = vmatpush1.msra.mxu0 0.0
        %360 = vmatprep.subr.mxu0 0.0
        %361 = vmatpush1.msra.mxu0 0.0
        %362 = vmatprep.subr.mxu0 0.0
        %363 = vmatpush1.msra.mxu0 0.0
        %364 = vmatprep.subr.mxu0 0.0
        %365 = vmatpush1.msra.mxu0 0.0
        %366 = vmatprep.subr.mxu0 0.0
        %367 = vmatpush1.msra.mxu0 0.0
        %368 = vmatprep.subr.mxu0 0.0
        %369 = vmatpush1.msra.mxu0 0.0
        %370 = vmatprep.subr.mxu0 0.0
        %371 = vmatpush1.msra.mxu0 0.0
        %372 = vmatprep.subr.mxu0 0.0
        %373 = vmatpush1.msra.mxu0 0.0
        %374 = vmatprep.subr.mxu0 0.0
        %375 = vmatpush1.msra.mxu0 0.0
        %376 = vmatprep.subr.mxu0 0.0
        %377 = vmatpush1.msra.mxu0 0.0
        %378 = vmatprep.subr.mxu0 0.0
        %379 = vmatpush1.msra.mxu0 0.0
        %380 = vmatprep.subr.mxu0 0.0
        %381 = vmatpush1.msra.mxu0 %v266
        %382 = vmatprep.subr.mxu0 0.0
        %383 = vmatpush2.msra.mxu0 0.0
        %384 = vmatprep.subr.mxu0 0.0
        %385 = vmatpush2.msra.mxu0 0.0
        %386 = vmatprep.subr.mxu0 0.0
        %387 = vmatpush2.msra.mxu0 0.0
        %388 = vmatprep.subr.mxu0 0.0
        %389 = vmatpush2.msra.mxu0 0.0
        %390 = vmatprep.subr.mxu0 0.0
        %391 = vmatpush2.msra.mxu0 0.0
        %392 = vmatprep.subr.mxu0 0.0
        %393 = vmatpush2.msra.mxu0 0.0
        %394 = vmatprep.subr.mxu0 0.0
        %395 = vmatpush2.msra.mxu0 0.0
        %396 = vmatprep.subr.mxu0 0.0
        %397 = vmatpush2.msra.mxu0 0.0
        %398 = vmatprep.subr.mxu0 0.0
        %399 = vmatpush2.msra.mxu0 0.0
        %400 = vmatprep.subr.mxu0 0.0
        %401 = vmatpush2.msra.mxu0 0.0
        %402 = vmatprep.subr.mxu0 0.0
        %403 = vmatpush2.msra.mxu0 0.0
        %404 = vmatprep.subr.mxu0 0.0
        %405 = vmatpush2.msra.mxu0 0.0
        %406 = vmatprep.subr.mxu0 0.0
        %407 = vmatpush2.msra.mxu0 0.0
        %408 = vmatprep.subr.mxu0 0.0
        %409 = vmatpush2.msra.mxu0 0.0
        %410 = vmatprep.subr.mxu0 0.0
        %411 = vmatpush2.msra.mxu0 0.0
        %412 = vmatprep.subr.mxu0 0.0
        %413 = vmatpush2.msra.mxu0 0.0
        %414 = vmatprep.mubr.f32.mxu0 0.0
        %415 = vmatmul.mubr.f32.gmra.mxu0 %v348
        %v416 = vpop.f32.mrf.mxu0
        %v417 = vadd.f32 %v344, %v416
        %v418 = vpop.f32.mrf.mxu0
        %419 = vdwg.mxu0
        %v421 = vsel %vm273, %v258, 0
        %423 = vmatprep.subr.mxu0 0.0
        %424 = vmatpush1.msra.mxu0 0.0
        %425 = vmatprep.subr.mxu0 0.0
        %426 = vmatpush1.msra.mxu0 0.0
        %427 = vmatprep.subr.mxu0 0.0
        %428 = vmatpush1.msra.mxu0 0.0
        %429 = vmatprep.subr.mxu0 0.0
        %430 = vmatpush1.msra.mxu0 0.0
        %431 = vmatprep.subr.mxu0 0.0
        %432 = vmatpush1.msra.mxu0 0.0
        %433 = vmatprep.subr.mxu0 0.0
        %434 = vmatpush1.msra.mxu0 0.0
        %435 = vmatprep.subr.mxu0 0.0
        %436 = vmatpush1.msra.mxu0 0.0
        %437 = vmatprep.subr.mxu0 0.0
        %438 = vmatpush1.msra.mxu0 0.0
        %439 = vmatprep.subr.mxu0 0.0
        %440 = vmatpush1.msra.mxu0 0.0
        %441 = vmatprep.subr.mxu0 0.0
        %442 = vmatpush1.msra.mxu0 0.0
        %443 = vmatprep.subr.mxu0 0.0
        %444 = vmatpush1.msra.mxu0 0.0
        %445 = vmatprep.subr.mxu0 0.0
        %446 = vmatpush1.msra.mxu0 0.0
        %447 = vmatprep.subr.mxu0 0.0
        %448 = vmatpush1.msra.mxu0 0.0
        %449 = vmatprep.subr.mxu0 0.0
        %450 = vmatpush1.msra.mxu0 0.0
        %451 = vmatprep.subr.mxu0 0.0
        %452 = vmatpush1.msra.mxu0 0.0
        %453 = vmatprep.subr.mxu0 0.0
        %454 = vmatpush1.msra.mxu0 %v272
        %455 = vmatprep.subr.mxu0 0.0
        %456 = vmatpush2.msra.mxu0 0.0
        %457 = vmatprep.subr.mxu0 0.0
        %458 = vmatpush2.msra.mxu0 0.0
        %459 = vmatprep.subr.mxu0 0.0
        %460 = vmatpush2.msra.mxu0 0.0
        %461 = vmatprep.subr.mxu0 0.0
        %462 = vmatpush2.msra.mxu0 0.0
        %463 = vmatprep.subr.mxu0 0.0
        %464 = vmatpush2.msra.mxu0 0.0
        %465 = vmatprep.subr.mxu0 0.0
        %466 = vmatpush2.msra.mxu0 0.0
        %467 = vmatprep.subr.mxu0 0.0
        %468 = vmatpush2.msra.mxu0 0.0
        %469 = vmatprep.subr.mxu0 0.0
        %470 = vmatpush2.msra.mxu0 0.0
        %471 = vmatprep.subr.mxu0 0.0
        %472 = vmatpush2.msra.mxu0 0.0
        %473 = vmatprep.subr.mxu0 0.0
        %474 = vmatpush2.msra.mxu0 0.0
        %475 = vmatprep.subr.mxu0 0.0
        %476 = vmatpush2.msra.mxu0 0.0
        %477 = vmatprep.subr.mxu0 0.0
        %478 = vmatpush2.msra.mxu0 0.0
        %479 = vmatprep.subr.mxu0 0.0
        %480 = vmatpush2.msra.mxu0 0.0
        %481 = vmatprep.subr.mxu0 0.0
        %482 = vmatpush2.msra.mxu0 0.0
        %483 = vmatprep.subr.mxu0 0.0
        %484 = vmatpush2.msra.mxu0 0.0
        %485 = vmatprep.subr.mxu0 0.0
        %486 = vmatpush2.msra.mxu0 0.0
        %487 = vmatprep.mubr.f32.mxu0 0.0
        %488 = vmatmul.mubr.f32.gmra.mxu0 %v421
        %v489 = vpop.f32.mrf.mxu0
        %v490 = vadd.f32 0.0, %v489
        %v491 = vpop.f32.mrf.mxu0
        %492 = vdwg.mxu0
        %v493 = vadd.f32 %v417, %v490
        %495 = vset.pattern.permute.xlu0 0
        %496 = vperm.xlu0 %495, %v264
        %v497 = vpop.permute.xlu0 %496
        %v499 = vadd.f32 %v493, %v497
        %vm500 = vcmp.gt.f32.partialorder %v499, 0.0
        %v501 = vmul.f32 %v499, 0.01
        %v502 = vsel %vm500, %v499, %v501
        %503 = vrot.lane.b32.xlu0 %v502, 1
        %v504 = vpop.permute.xlu0 %503
        %v505 = vsel %vm252, %v504, 0.0
        %506 = vrot.lane.b32.xlu0 %v502, 127
        %v507 = vpop.permute.xlu0 %506
        %v508 = vsel %vm253, %v507, 0.0
        %v510 = vsel %vm273, %v259, 0
        %512 = vmatprep.subr.mxu0 0.0
        %513 = vmatpush1.msra.mxu0 0.0
        %514 = vmatprep.subr.mxu0 0.0
        %515 = vmatpush1.msra.mxu0 0.0
        %516 = vmatprep.subr.mxu0 0.0
        %517 = vmatpush1.msra.mxu0 0.0
        %518 = vmatprep.subr.mxu0 0.0
        %519 = vmatpush1.msra.mxu0 0.0
        %520 = vmatprep.subr.mxu0 0.0
        %521 = vmatpush1.msra.mxu0 0.0
        %522 = vmatprep.subr.mxu0 0.0
        %523 = vmatpush1.msra.mxu0 0.0
        %524 = vmatprep.subr.mxu0 0.0
        %525 = vmatpush1.msra.mxu0 0.0
        %526 = vmatprep.subr.mxu0 0.0
        %527 = vmatpush1.msra.mxu0 0.0
        %528 = vmatprep.subr.mxu0 0.0
        %529 = vmatpush1.msra.mxu0 0.0
        %530 = vmatprep.subr.mxu0 0.0
        %531 = vmatpush1.msra.mxu0 0.0
        %532 = vmatprep.subr.mxu0 0.0
        %533 = vmatpush1.msra.mxu0 0.0
        %534 = vmatprep.subr.mxu0 0.0
        %535 = vmatpush1.msra.mxu0 0.0
        %536 = vmatprep.subr.mxu0 0.0
        %537 = vmatpush1.msra.mxu0 0.0
        %538 = vmatprep.subr.mxu0 0.0
        %539 = vmatpush1.msra.mxu0 0.0
        %540 = vmatprep.subr.mxu0 0.0
        %541 = vmatpush1.msra.mxu0 0.0
        %542 = vmatprep.subr.mxu0 0.0
        %543 = vmatpush1.msra.mxu0 %v505
        %544 = vmatprep.subr.mxu0 0.0
        %545 = vmatpush2.msra.mxu0 0.0
        %546 = vmatprep.subr.mxu0 0.0
        %547 = vmatpush2.msra.mxu0 0.0
        %548 = vmatprep.subr.mxu0 0.0
        %549 = vmatpush2.msra.mxu0 0.0
        %550 = vmatprep.subr.mxu0 0.0
        %551 = vmatpush2.msra.mxu0 0.0
        %552 = vmatprep.subr.mxu0 0.0
        %553 = vmatpush2.msra.mxu0 0.0
        %554 = vmatprep.subr.mxu0 0.0
        %555 = vmatpush2.msra.mxu0 0.0
        %556 = vmatprep.subr.mxu0 0.0
        %557 = vmatpush2.msra.mxu0 0.0
        %558 = vmatprep.subr.mxu0 0.0
        %559 = vmatpush2.msra.mxu0 0.0
        %560 = vmatprep.subr.mxu0 0.0
        %561 = vmatpush2.msra.mxu0 0.0
        %562 = vmatprep.subr.mxu0 0.0
        %563 = vmatpush2.msra.mxu0 0.0
        %564 = vmatprep.subr.mxu0 0.0
        %565 = vmatpush2.msra.mxu0 0.0
        %566 = vmatprep.subr.mxu0 0.0
        %567 = vmatpush2.msra.mxu0 0.0
        %568 = vmatprep.subr.mxu0 0.0
        %569 = vmatpush2.msra.mxu0 0.0
        %570 = vmatprep.subr.mxu0 0.0
        %571 = vmatpush2.msra.mxu0 0.0
        %572 = vmatprep.subr.mxu0 0.0
        %573 = vmatpush2.msra.mxu0 0.0
        %574 = vmatprep.subr.mxu0 0.0
        %575 = vmatpush2.msra.mxu0 0.0
        %576 = vmatprep.mubr.f32.mxu0 0.0
        %577 = vmatmul.mubr.f32.gmra.mxu0 %v510
        %v578 = vpop.f32.mrf.mxu0
        %v579 = vadd.f32 0.0, %v578
        %v580 = vpop.f32.mrf.mxu0
        %581 = vdwg.mxu0
        %v583 = vsel %vm273, %v261, 0
        %585 = vmatprep.subr.mxu0 0.0
        %586 = vmatpush1.msra.mxu0 0.0
        %587 = vmatprep.subr.mxu0 0.0
        %588 = vmatpush1.msra.mxu0 0.0
        %589 = vmatprep.subr.mxu0 0.0
        %590 = vmatpush1.msra.mxu0 0.0
        %591 = vmatprep.subr.mxu0 0.0
        %592 = vmatpush1.msra.mxu0 0.0
        %593 = vmatprep.subr.mxu0 0.0
        %594 = vmatpush1.msra.mxu0 0.0
        %595 = vmatprep.subr.mxu0 0.0
        %596 = vmatpush1.msra.mxu0 0.0
        %597 = vmatprep.subr.mxu0 0.0
        %598 = vmatpush1.msra.mxu0 0.0
        %599 = vmatprep.subr.mxu0 0.0
        %600 = vmatpush1.msra.mxu0 0.0
        %601 = vmatprep.subr.mxu0 0.0
        %602 = vmatpush1.msra.mxu0 0.0
        %603 = vmatprep.subr.mxu0 0.0
        %604 = vmatpush1.msra.mxu0 0.0
        %605 = vmatprep.subr.mxu0 0.0
        %606 = vmatpush1.msra.mxu0 0.0
        %607 = vmatprep.subr.mxu0 0.0
        %608 = vmatpush1.msra.mxu0 0.0
        %609 = vmatprep.subr.mxu0 0.0
        %610 = vmatpush1.msra.mxu0 0.0
        %611 = vmatprep.subr.mxu0 0.0
        %612 = vmatpush1.msra.mxu0 0.0
        %613 = vmatprep.subr.mxu0 0.0
        %614 = vmatpush1.msra.mxu0 0.0
        %615 = vmatprep.subr.mxu0 0.0
        %616 = vmatpush1.msra.mxu0 %v502
        %617 = vmatprep.subr.mxu0 0.0
        %618 = vmatpush2.msra.mxu0 0.0
        %619 = vmatprep.subr.mxu0 0.0
        %620 = vmatpush2.msra.mxu0 0.0
        %621 = vmatprep.subr.mxu0 0.0
        %622 = vmatpush2.msra.mxu0 0.0
        %623 = vmatprep.subr.mxu0 0.0
        %624 = vmatpush2.msra.mxu0 0.0
        %625 = vmatprep.subr.mxu0 0.0
        %626 = vmatpush2.msra.mxu0 0.0
        %627 = vmatprep.subr.mxu0 0.0
        %628 = vmatpush2.msra.mxu0 0.0
        %629 = vmatprep.subr.mxu0 0.0
        %630 = vmatpush2.msra.mxu0 0.0
        %631 = vmatprep.subr.mxu0 0.0
        %632 = vmatpush2.msra.mxu0 0.0
        %633 = vmatprep.subr.mxu0 0.0
        %634 = vmatpush2.msra.mxu0 0.0
        %635 = vmatprep.subr.mxu0 0.0
        %636 = vmatpush2.msra.mxu0 0.0
        %637 = vmatprep.subr.mxu0 0.0
        %638 = vmatpush2.msra.mxu0 0.0
        %639 = vmatprep.subr.mxu0 0.0
        %640 = vmatpush2.msra.mxu0 0.0
        %641 = vmatprep.subr.mxu0 0.0
        %642 = vmatpush2.msra.mxu0 0.0
        %643 = vmatprep.subr.mxu0 0.0
        %644 = vmatpush2.msra.mxu0 0.0
        %645 = vmatprep.subr.mxu0 0.0
        %646 = vmatpush2.msra.mxu0 0.0
        %647 = vmatprep.subr.mxu0 0.0
        %648 = vmatpush2.msra.mxu0 0.0
        %649 = vmatprep.mubr.f32.mxu0 0.0
        %650 = vmatmul.mubr.f32.gmra.mxu0 %v583
        %v651 = vpop.f32.mrf.mxu0
        %v652 = vadd.f32 %v579, %v651
        %v653 = vpop.f32.mrf.mxu0
        %654 = vdwg.mxu0
        %v656 = vsel %vm273, %v263, 0
        %658 = vmatprep.subr.mxu0 0.0
        %659 = vmatpush1.msra.mxu0 0.0
        %660 = vmatprep.subr.mxu0 0.0
        %661 = vmatpush1.msra.mxu0 0.0
        %662 = vmatprep.subr.mxu0 0.0
        %663 = vmatpush1.msra.mxu0 0.0
        %664 = vmatprep.subr.mxu0 0.0
        %665 = vmatpush1.msra.mxu0 0.0
        %666 = vmatprep.subr.mxu0 0.0
        %667 = vmatpush1.msra.mxu0 0.0
        %668 = vmatprep.subr.mxu0 0.0
        %669 = vmatpush1.msra.mxu0 0.0
        %670 = vmatprep.subr.mxu0 0.0
        %671 = vmatpush1.msra.mxu0 0.0
        %672 = vmatprep.subr.mxu0 0.0
        %673 = vmatpush1.msra.mxu0 0.0
        %674 = vmatprep.subr.mxu0 0.0
        %675 = vmatpush1.msra.mxu0 0.0
        %676 = vmatprep.subr.mxu0 0.0
        %677 = vmatpush1.msra.mxu0 0.0
        %678 = vmatprep.subr.mxu0 0.0
        %679 = vmatpush1.msra.mxu0 0.0
        %680 = vmatprep.subr.mxu0 0.0
        %681 = vmatpush1.msra.mxu0 0.0
        %682 = vmatprep.subr.mxu0 0.0
        %683 = vmatpush1.msra.mxu0 0.0
        %684 = vmatprep.subr.mxu0 0.0
        %685 = vmatpush1.msra.mxu0 0.0
        %686 = vmatprep.subr.mxu0 0.0
        %687 = vmatpush1.msra.mxu0 0.0
        %688 = vmatprep.subr.mxu0 0.0
        %689 = vmatpush1.msra.mxu0 %v508
        %690 = vmatprep.subr.mxu0 0.0
        %691 = vmatpush2.msra.mxu0 0.0
        %692 = vmatprep.subr.mxu0 0.0
        %693 = vmatpush2.msra.mxu0 0.0
        %694 = vmatprep.subr.mxu0 0.0
        %695 = vmatpush2.msra.mxu0 0.0
        %696 = vmatprep.subr.mxu0 0.0
        %697 = vmatpush2.msra.mxu0 0.0
        %698 = vmatprep.subr.mxu0 0.0
        %699 = vmatpush2.msra.mxu0 0.0
        %700 = vmatprep.subr.mxu0 0.0
        %701 = vmatpush2.msra.mxu0 0.0
        %702 = vmatprep.subr.mxu0 0.0
        %703 = vmatpush2.msra.mxu0 0.0
        %704 = vmatprep.subr.mxu0 0.0
        %705 = vmatpush2.msra.mxu0 0.0
        %706 = vmatprep.subr.mxu0 0.0
        %707 = vmatpush2.msra.mxu0 0.0
        %708 = vmatprep.subr.mxu0 0.0
        %709 = vmatpush2.msra.mxu0 0.0
        %710 = vmatprep.subr.mxu0 0.0
        %711 = vmatpush2.msra.mxu0 0.0
        %712 = vmatprep.subr.mxu0 0.0
        %713 = vmatpush2.msra.mxu0 0.0
        %714 = vmatprep.subr.mxu0 0.0
        %715 = vmatpush2.msra.mxu0 0.0
        %716 = vmatprep.subr.mxu0 0.0
        %717 = vmatpush2.msra.mxu0 0.0
        %718 = vmatprep.subr.mxu0 0.0
        %719 = vmatpush2.msra.mxu0 0.0
        %720 = vmatprep.subr.mxu0 0.0
        %721 = vmatpush2.msra.mxu0 0.0
        %722 = vmatprep.mubr.f32.mxu0 0.0
        %723 = vmatmul.mubr.f32.gmra.mxu0 %v656
        %v724 = vpop.f32.mrf.mxu0
        %v725 = vadd.f32 0.0, %v724
        %v726 = vpop.f32.mrf.mxu0
        %727 = vdwg.mxu0
        %v728 = vadd.f32 %v652, %v725
        %730 = vset.pattern.permute.xlu0 0
        %731 = vperm.xlu0 %730, %v265
        %v732 = vpop.permute.xlu0 %731
        %v734 = vadd.f32 %v728, %v732
        %v735 = vadd.f32 %v734, %v266
        %vm736 = vcmp.gt.f32.partialorder %v735, 0.0
        %v737 = vmul.f32 %v735, 0.01
        %v738 = vsel %vm736, %v735, %v737
        %739 = vst [vmem:[%s245] sm:$0xff] %v738
        %s740 = sand.u32 %s139, 1
        %s741 = scalar_lea.sflag [#allocation4], %s740
        %s742 = sand.u32 %s139, 1
        %s743 = smul.addr %s742, 8
        %s744 = scalar_lea.vmem [#allocation7], %s743
        // Predicated region
        $region49: #{tpu_custom_call.1} parent=39 // pred_check
          %p745 = pneg %p149
        $region50: #{tpu_custom_call.1} parent=39 // pred_check_branch
          %747 = sbr.rel (%p745) target = $region52
        $region51: #{tpu_custom_call.1} parent=39 // pred_region
          %s749 = ssub.s32 128, 128
          %750 = vsyncadd %s741, %s749
          %s751 = smul.addr %s21, 128
          %s752 = scalar_lea.hbm %s5, %s751
          %s754 = sshll.u32 %s744, 4
          %s755 = int_to_ptr.vmem [resolvable:$true] %s754
          %757 = dma.vmem_to_hbm [thread:$0]  %s755, 128, %s752, %s741
        $region52: #{tpu_custom_call.1} parent=39 // pred_fallthru
          _
      $region40: #{tpu_custom_call.1} parent=5 // pred_fallthru
        _
      %p758 = scmp.le.s32.totalorder 2, %s16
      // Predicated region
      $region53: #{tpu_custom_call.1} parent=5 // pred_check
        %p759 = pneg %p758
      $region54: #{tpu_custom_call.1} parent=5 // pred_check_branch
        %761 = sbr.rel (%p759) target = $region56
      $region55: #{tpu_custom_call.1} parent=5 // pred_region
        %s762 = ssub.s32 %s16, 2
        // Predicated region
        $region57: #{tpu_custom_call.1} parent=55 // pred_check
          %p763 = pneg %p155
        $region58: #{tpu_custom_call.1} parent=55 // pred_check_branch
          %765 = sbr.rel (%p763) target = $region60
        $region59: #{tpu_custom_call.1} parent=55 // pred_region
          %s766 = sand.u32 %s140, 1
          %s767 = scalar_lea.sflag [#allocation4], %s766
          %s768 = sand.u32 %s140, 1
          %s769 = smul.addr %s768, 8
          %s770 = scalar_lea.vmem [#allocation7], %s769
          %771 = dma.done %s767, 128
        $region60: #{tpu_custom_call.1} parent=55 // pred_fallthru
          _
      $region56: #{tpu_custom_call.1} parent=5 // pred_fallthru
        _
    $region6: #{tpu_custom_call.1} parent=1 // loop_footer
      %s20 = sadd.s32 1, %s16
    $region7: #{tpu_custom_call.1} parent=1 // loop_footer_branch
      %15 = sbr.rel target = $region3
    $region8: #{tpu_custom_call.1} parent=1 // loop_exit
      _
    %772 = vsyncpa [#allocation3], 1
    %s773 = scalar_lea.sflag [#allocation3], 1
    %774 = vsyncpa %s773, 1
    %775 = vsyncpa [#allocation6], 1
    %776 = vsyncpa [#allocation4], 1
    %s777 = scalar_lea.sflag [#allocation4], 1
    %778 = vsyncpa %s777, 1

</llo_original>
